<compile_context>
chip_gen: v7x
topology: tpu7x:2x2x1
jax: 0.10.0
libtpu: 0.0.40
codegen_flags: <defaults>
</compile_context>

<pallas_src>
import math
import functools

import jax
import jax.numpy as jnp
from jax import lax
from jax.experimental import pallas as pl
from jax.experimental.pallas import tpu as pltpu

# ----- module hyper-parameters (from __init__, deterministic) ---------------
NUM_BITS = 3
NUM_LEVELS = 2 ** NUM_BITS          # 8 quantization levels
INIT_A = 0.55                       # fixed_a
FIXED_T = 100.5                     # fixed_T (softmax temperature)
EPSILON = 1e-6
W_MIN_INIT = 0.0                    # nn.Parameter(torch.tensor(0.0))
W_MAX_INIT = 1.0                    # nn.Parameter(torch.tensor(1.0))
INV_A = 1.0 / INIT_A

# ----- factorized-softmax constants (compile time) ---------------------------
# With u = wn * (L-1), tau = T/(L-1), c = exp(-tau) < 1, the level weights
# exp(-T|wn - j/(L-1)|) factor into {exp(-tau*d), c^m} terms with m >= 0, so
# the 8-term softmax collapses to ONE per-element exp plus two geometric-sum
# table lookups:  G(p) = sum_{m<=p} c^m,  H(p) = sum_{m<=p} m*c^m.
TAU = FIXED_T / (NUM_LEVELS - 1)
C_DECAY = math.exp(-TAU)
_G_TABLE = tuple(float(sum(C_DECAY ** m for m in range(p + 1)))
                 for p in range(NUM_LEVELS - 1))
_H_TABLE = tuple(float(sum(m * C_DECAY ** m for m in range(p + 1)))
                 for p in range(NUM_LEVELS - 1))

# ----- tiling ----------------------------------------------------------------
LANE_W = 512                         # lane-dense last dim (multiple of 128)
SUBLANES = 8                         # min row alignment
TILE_ROWS = 256                      # fallback tile (256, 512) f32 = 512 KiB
FUSED_MAX_ELEMS = 512 * 1024         # <= 2 MiB f32 -> single fused kernel


# ============================= elementwise helpers ===========================

def _sign(x):
    # matches torch.sign: sign(0) == 0
    one = jnp.ones_like(x)
    return jnp.where(x > 0, one, jnp.where(x < 0, -one, jnp.zeros_like(x)))


def _pow_abs(x, p):
    # |x| ** p as exp(p * log|x|); log(0) -> -inf -> exp -> 0 (== 0**p, p > 0)
    return jnp.exp(p * jnp.log(jnp.abs(x)))


def _transform(w, offset):
    ws = w - offset
    return _sign(ws) * _pow_abs(ws, INIT_A) + EPSILON


def _dual_lookup(k, table_a, table_b):
    """Select-chain lookup of two small tables at integer-valued float k."""
    a = jnp.full_like(k, table_a[0])
    b = jnp.full_like(k, table_b[0])
    for m in range(1, len(table_a)):
        msk = k >= (m - 0.5)
        a = jnp.where(msk, jnp.float32(table_a[m]), a)
        b = jnp.where(msk, jnp.float32(table_b[m]), b)
    return a, b


def _soft_quant(wt, offset, w_min_c, rng, inv_rng):
    """Softmax-weighted quantize + dequantize; one exp per element.

    Mathematically identical to softmax(-T*|wn - q_j|) weighted mean of the
    q_j (verified against the dense reference); only non-positive exponents
    are ever materialized, so it is overflow-safe for out-of-range wn.
    """
    u = (wt - w_min_c) * inv_rng * (NUM_LEVELS - 1.0)
    k = jnp.clip(jnp.floor(u), 0.0, NUM_LEVELS - 2.0)   # lower bracket level
    f = u - k
    d_lo = jnp.abs(f)                                   # distance to level k
    d_hi = jnp.abs(1.0 - f)                             # distance to level k+1
    # stable: factor out the dominant (nearest-level) weight -> one exp
    e_delta = jnp.exp(-TAU * jnp.abs(d_lo - d_hi))
    one = jnp.ones_like(e_delta)
    e_lo = jnp.where(d_lo <= d_hi, one, e_delta)
    e_hi = jnp.where(d_hi <= d_lo, one, e_delta)

    g_lo, h_lo = _dual_lookup(k, _G_TABLE, _H_TABLE)
    kc = (NUM_LEVELS - 2.0) - k
    g_hi, h_hi = _dual_lookup(kc, _G_TABLE, _H_TABLE)

    denom = e_lo * g_lo + e_hi * g_hi                   # >= 1, never zero
    numer = e_lo * (k * g_lo - h_lo) + e_hi * ((k + 1.0) * g_hi + h_hi)
    # divide via the EUP reciprocal path (approx=True possible if tolerance allows)
    wq = numer * pl.reciprocal(denom) * (1.0 / (NUM_LEVELS - 1.0))

    wd = wq * rng + w_min_c
    return _pow_abs(wd, INV_A) * _sign(wd) + offset


def _as11(x):
    # broadcast a rank-0 value into a (1,1) output block
    return jnp.zeros((1, 1), jnp.float32) + x


# ============================= fused single-block kernel =====================

def _fused_kernel(params_ref, w_ref, o_ref, *, n_valid, n_padded):
    """mean -> transform -> min/max -> clamp -> soft quant, all in one pass."""
    w = w_ref[...]
    offset = jnp.sum(w) * (1.0 / n_valid)        # zero padding contributes 0
    wt = _transform(w, offset)

    if n_padded > n_valid:                        # mask padded tail (static)
        rows = lax.broadcasted_iota(jnp.int32, w.shape, 0)
        cols = lax.broadcasted_iota(jnp.int32, w.shape, 1)
        valid = (rows * w.shape[1] + cols) < n_valid
        tmin = jnp.min(jnp.where(valid, wt, jnp.inf))
        tmax = jnp.max(jnp.where(valid, wt, -jnp.inf))
    else:
        tmin = jnp.min(wt)
        tmax = jnp.max(wt)

    # scalar clamp glue (matches torch .clamp / .item() semantics)
    w_min_c = jnp.minimum(jnp.maximum(params_ref[0], tmin), tmax - EPSILON)
    w_max_c = jnp.minimum(jnp.maximum(params_ref[1], w_min_c + EPSILON), tmax)
    rng = w_max_c - w_min_c
    inv_rng = 1.0 / (rng + EPSILON)               # one-time scalar, hoisted

    o_ref[...] = _soft_quant(wt, offset, w_min_c, rng, inv_rng)


def _run_fused(w2d, params, n_valid):
    rows, cols = w2d.shape
    kern = functools.partial(_fused_kernel, n_valid=n_valid,
                             n_padded=rows * cols)
    return pl.pallas_call(
        kern,
        out_shape=jax.ShapeDtypeStruct(w2d.shape, jnp.float32),
        grid=(1,),
        in_specs=[pl.BlockSpec(memory_space=pltpu.MemorySpace.SMEM),
                  pl.BlockSpec((rows, cols), lambda i: (0, 0))],
        out_specs=pl.BlockSpec((rows, cols), lambda i: (0, 0)),
        compiler_params=pltpu.CompilerParams(
            dimension_semantics=("arbitrary",),
            vmem_limit_bytes=48 * 1024 * 1024),
    )(params, w2d)


# ============================= fallback 3-pass kernels =======================
# Used only when the tensor is too large for the fused whole-block path.
# Each reduction writes per-tile partials (fully parallel grid -> both TCs on
# v7x); the tiny final combine happens in the host-side glue.

def _psum_kernel(w_ref, out_ref):
    out_ref[...] = _as11(jnp.sum(w_ref[...]))


def _pminmax_kernel(off_ref, w_ref, min_ref, max_ref, *, n_valid, n_padded):
    wt = _transform(w_ref[...], off_ref[0])
    if n_padded > n_valid:
        tr, lw = w_ref.shape
        base = pl.program_id(0) * (tr * lw)
        rows = lax.broadcasted_iota(jnp.int32, (tr, lw), 0)
        cols = lax.broadcasted_iota(jnp.int32, (tr, lw), 1)
        valid = (base + rows * lw + cols) < n_valid
        min_ref[...] = _as11(jnp.min(jnp.where(valid, wt, jnp.inf)))
        max_ref[...] = _as11(jnp.max(jnp.where(valid, wt, -jnp.inf)))
    else:
        min_ref[...] = _as11(jnp.min(wt))
        max_ref[...] = _as11(jnp.max(wt))


def _quant_kernel(s_ref, w_ref, o_ref):
    # s_ref (SMEM) = [offset, w_min_c, rng, inv_rng]
    offset = s_ref[0]
    w_min_c = s_ref[1]
    rng = s_ref[2]
    inv_rng = s_ref[3]
    wt = _transform(w_ref[...], offset)
    o_ref[...] = _soft_quant(wt, offset, w_min_c, rng, inv_rng)


def _run_partial_sum(w2d):
    n_tiles = w2d.shape[0] // TILE_ROWS
    partial = pl.pallas_call(
        _psum_kernel,
        out_shape=jax.ShapeDtypeStruct((n_tiles, 1), jnp.float32),
        grid=(n_tiles,),
        in_specs=[pl.BlockSpec((TILE_ROWS, LANE_W), lambda i: (i, 0))],
        out_specs=pl.BlockSpec((1, 1), lambda i: (i, 0)),
        compiler_params=pltpu.CompilerParams(
            dimension_semantics=("parallel",)),
    )(w2d)
    return jnp.sum(partial)


def _run_partial_minmax(w2d, offset, n_valid, n_padded):
    n_tiles = w2d.shape[0] // TILE_ROWS
    off = jnp.reshape(offset, (1,)).astype(jnp.float32)
    kern = functools.partial(_pminmax_kernel, n_valid=n_valid,
                             n_padded=n_padded)
    pmin, pmax = pl.pallas_call(
        kern,
        out_shape=(jax.ShapeDtypeStruct((n_tiles, 1), jnp.float32),
                   jax.ShapeDtypeStruct((n_tiles, 1), jnp.float32)),
        grid=(n_tiles,),
        in_specs=[pl.BlockSpec(memory_space=pltpu.MemorySpace.SMEM),
                  pl.BlockSpec((TILE_ROWS, LANE_W), lambda i: (i, 0))],
        out_specs=(pl.BlockSpec((1, 1), lambda i: (i, 0)),
                   pl.BlockSpec((1, 1), lambda i: (i, 0))),
        compiler_params=pltpu.CompilerParams(
            dimension_semantics=("parallel",)),
    )(off, w2d)
    return jnp.min(pmin), jnp.max(pmax)


def _run_quant(w2d, scalars):
    n_tiles = w2d.shape[0] // TILE_ROWS
    return pl.pallas_call(
        _quant_kernel,
        out_shape=jax.ShapeDtypeStruct(w2d.shape, jnp.float32),
        grid=(n_tiles,),
        in_specs=[pl.BlockSpec(memory_space=pltpu.MemorySpace.SMEM),
                  pl.BlockSpec((TILE_ROWS, LANE_W), lambda i: (i, 0))],
        out_specs=pl.BlockSpec((TILE_ROWS, LANE_W), lambda i: (i, 0)),
        compiler_params=pltpu.CompilerParams(
            dimension_semantics=("parallel",)),
    )(scalars, w2d)


# ============================= forward (module equivalent) ===================

def clipping_optimized_quantization(w, w_min_param=W_MIN_INIT,
                                    w_max_param=W_MAX_INIT):
    orig_shape = w.shape
    flat = jnp.reshape(w, (-1,)).astype(jnp.float32)
    n = flat.shape[0]

    fused = n <= FUSED_MAX_ELEMS
    block_elems = (SUBLANES if fused else TILE_ROWS) * LANE_W
    padded = -(-n // block_elems) * block_elems
    pad = padded - n
    if pad:
        flat = jnp.concatenate([flat, jnp.zeros((pad,), jnp.float32)])
    w2d = flat.reshape(padded // LANE_W, LANE_W)       # lane-dense layout

    if fused:
        params = jnp.stack([jnp.float32(w_min_param),
                            jnp.float32(w_max_param)])
        out2d = _run_fused(w2d, params, n)
    else:
        # pass 1: global mean of w  (zero padding contributes nothing)
        offset = _run_partial_sum(w2d) / jnp.float32(n)
        # pass 2: global min / max of the power-transformed tensor
        tmin, tmax = _run_partial_minmax(w2d, offset, n, padded)
        w_min_c = jnp.clip(jnp.float32(w_min_param), tmin, tmax - EPSILON)
        w_max_c = jnp.clip(jnp.float32(w_max_param), w_min_c + EPSILON, tmax)
        rng = w_max_c - w_min_c
        inv_rng = 1.0 / (rng + EPSILON)
        scalars = jnp.stack([offset, w_min_c, rng, inv_rng]).astype(jnp.float32)
        # pass 3: elementwise soft quantization + de-quantization
        out2d = _run_quant(w2d, scalars)

    return out2d.reshape(-1)[:n].reshape(orig_shape)


# ============================= pure-JAX reference ============================

def _reference(w, w_min_param=W_MIN_INIT, w_max_param=W_MAX_INIT):
    w = w.astype(jnp.float32)
    offset = jnp.mean(w)
    ws = w - offset
    wt = jnp.sign(ws) * jnp.abs(ws) ** INIT_A + EPSILON
    w_min_c = jnp.clip(jnp.float32(w_min_param), wt.min(), wt.max() - EPSILON)
    w_max_c = jnp.clip(jnp.float32(w_max_param), w_min_c + EPSILON, wt.max())
    wn = (wt - w_min_c) / (w_max_c - w_min_c + EPSILON)
    q = jnp.linspace(0.0, 1.0, NUM_LEVELS)
    d = -jnp.abs(wn[..., None] - q)
    sw = jax.nn.softmax(d * FIXED_T, axis=-1)
    wq = jnp.sum(sw * q, axis=-1)
    wd = wq * (w_max_c - w_min_c) + w_min_c
    return jnp.abs(wd) ** (1.0 / INIT_A) * jnp.sign(wd) + offset


# ============================= demo ==========================================

if __name__ == "__main__":
    key = jax.random.PRNGKey(0)
    # NCHW-style synthetic input (batch=2, channels=4, spatial=16x16)
    x = jax.random.normal(key, (2, 4, 16, 16), dtype=jnp.float32)

    out = clipping_optimized_quantization(x)
    out = jax.block_until_ready(out)

    ref = _reference(x)
    assert out.shape == x.shape
    assert out.dtype == jnp.float32
    if not jnp.allclose(out, ref, rtol=2e-3, atol=2e-3):
        raise AssertionError("Pallas kernel output mismatches pure-JAX reference")

    print("KERNEL_OK")
</pallas_src>

<mosaic_0001>
module attributes {stable_mosaic.version = 11 : i64} {
  func.func @_fused_kernel(%arg0: i32, %arg1: memref<2xf32, #tpu.memory_space<smem>>, %arg2: memref<8x512xf32, #tpu.memory_space<vmem>>, %arg3: memref<8x512xf32, #tpu.memory_space<vmem>>) attributes {dimension_semantics = [#tpu.dimension_semantics<arbitrary>], iteration_bounds = array<i64: 1>, scalar_prefetch = 0 : i64, scratch_operands = 0 : i64, tpu.core_type = #tpu.core_type<tc>, window_params = [{transform_indices = @transform_0, window_bounds = array<i64: 2>}, {pipeline_mode = #tpu.pipeline_mode<synchronous>, transform_indices = @transform_1, window_bounds = array<i64: 8, 512>}, {pipeline_mode = #tpu.pipeline_mode<synchronous>, transform_indices = @transform_2, window_bounds = array<i64: 8, 512>}]} {
    %c0 = arith.constant 0 : index
    %c0_0 = arith.constant 0 : index
    %0 = vector.load %arg2[%c0, %c0_0] : memref<8x512xf32, #tpu.memory_space<vmem>>, vector<8x512xf32>
    %1 = vector.shape_cast %0 : vector<8x512xf32> to vector<1x8x512xf32>
    %cst = arith.constant dense<0.000000e+00> : vector<1xf32>
    %2 = vector.multi_reduction <add>, %1, %cst [1, 2] : vector<1x8x512xf32> to vector<1xf32>
    %3 = vector.shape_cast %2 : vector<1xf32> to vector<1x1x1xf32>
    %4 = vector.extract %3[0, 0, 0] : f32 from vector<1x1x1xf32>
    %cst_1 = arith.constant 4.8828125E-4 : f32
    %5 = arith.mulf %4, %cst_1 : f32
    %6 = vector.broadcast %5 : f32 to vector<8x512xf32>
    %7 = arith.subf %0, %6 : vector<8x512xf32>
    %cst_2 = arith.constant 1.000000e+00 : f32
    %8 = vector.broadcast %cst_2 : f32 to vector<8x512xf32>
    %cst_3 = arith.constant 0.000000e+00 : f32
    %9 = vector.broadcast %cst_3 : f32 to vector<8x512xf32>
    %10 = arith.cmpf ogt, %7, %9 : vector<8x512xf32>
    %cst_4 = arith.constant 0.000000e+00 : f32
    %11 = vector.broadcast %cst_4 : f32 to vector<8x512xf32>
    %12 = arith.cmpf olt, %7, %11 : vector<8x512xf32>
    %cst_5 = arith.constant 0.000000e+00 : f32
    %13 = vector.broadcast %cst_5 : f32 to vector<8x512xf32>
    %14 = arith.subf %13, %8 : vector<8x512xf32>
    %cst_6 = arith.constant 0.000000e+00 : f32
    %15 = vector.broadcast %cst_6 : f32 to vector<8x512xf32>
    %16 = arith.select %12, %14, %15 : vector<8x512xi1>, vector<8x512xf32>
    %17 = arith.select %10, %8, %16 : vector<8x512xi1>, vector<8x512xf32>
    %18 = math.absf %7 : vector<8x512xf32>
    %19 = math.log %18 : vector<8x512xf32>
    %cst_7 = arith.constant 5.500000e-01 : f32
    %20 = vector.broadcast %cst_7 : f32 to vector<8x512xf32>
    %21 = arith.mulf %20, %19 : vector<8x512xf32>
    %22 = math.exp %21 : vector<8x512xf32>
    %23 = arith.mulf %17, %22 : vector<8x512xf32>
    %cst_8 = arith.constant 9.99999997E-7 : f32
    %24 = vector.broadcast %cst_8 : f32 to vector<8x512xf32>
    %25 = arith.addf %23, %24 : vector<8x512xf32>
    %26 = tpu.iota {dimensions = array<i32: 0>} : vector<8x512xi32>
    %27 = tpu.iota {dimensions = array<i32: 1>} : vector<8x512xi32>
    %c512_i32 = arith.constant 512 : i32
    %28 = vector.broadcast %c512_i32 : i32 to vector<8x512xi32>
    %29 = arith.muli %26, %28 : vector<8x512xi32>
    %30 = arith.addi %29, %27 : vector<8x512xi32>
    %c2048_i32 = arith.constant 2048 : i32
    %31 = vector.broadcast %c2048_i32 : i32 to vector<8x512xi32>
    %32 = arith.cmpi slt, %30, %31 : vector<8x512xi32>
    %cst_9 = arith.constant 0x7F800000 : f32
    %33 = vector.broadcast %cst_9 : f32 to vector<8x512xf32>
    %34 = arith.select %32, %25, %33 : vector<8x512xi1>, vector<8x512xf32>
    %35 = vector.shape_cast %34 : vector<8x512xf32> to vector<1x8x512xf32>
    %cst_10 = arith.constant dense<0x7F800000> : vector<1xf32>
    %36 = vector.multi_reduction <minimumf>, %35, %cst_10 [1, 2] : vector<1x8x512xf32> to vector<1xf32>
    %37 = vector.shape_cast %36 : vector<1xf32> to vector<1x1x1xf32>
    %38 = vector.extract %37[0, 0, 0] : f32 from vector<1x1x1xf32>
    %cst_11 = arith.constant 0xFF800000 : f32
    %39 = vector.broadcast %cst_11 : f32 to vector<8x512xf32>
    %40 = arith.select %32, %25, %39 : vector<8x512xi1>, vector<8x512xf32>
    %41 = vector.shape_cast %40 : vector<8x512xf32> to vector<1x8x512xf32>
    %cst_12 = arith.constant dense<0xFF800000> : vector<1xf32>
    %42 = vector.multi_reduction <maximumf>, %41, %cst_12 [1, 2] : vector<1x8x512xf32> to vector<1xf32>
    %43 = vector.shape_cast %42 : vector<1xf32> to vector<1x1x1xf32>
    %44 = vector.extract %43[0, 0, 0] : f32 from vector<1x1x1xf32>
    %c0_13 = arith.constant 0 : index
    %45 = memref.load %arg1[%c0_13] : memref<2xf32, #tpu.memory_space<smem>>
    %46 = arith.maximumf %45, %38 : f32
    %cst_14 = arith.constant 9.99999997E-7 : f32
    %47 = arith.subf %44, %cst_14 : f32
    %48 = arith.minimumf %46, %47 : f32
    %c1 = arith.constant 1 : index
    %49 = memref.load %arg1[%c1] : memref<2xf32, #tpu.memory_space<smem>>
    %cst_15 = arith.constant 9.99999997E-7 : f32
    %50 = arith.addf %48, %cst_15 : f32
    %51 = arith.maximumf %49, %50 : f32
    %52 = arith.minimumf %51, %44 : f32
    %53 = arith.subf %52, %48 : f32
    %cst_16 = arith.constant 9.99999997E-7 : f32
    %54 = arith.addf %53, %cst_16 : f32
    %cst_17 = arith.constant 1.000000e+00 : f32
    %55 = arith.divf %cst_17, %54 : f32
    %56 = vector.broadcast %48 : f32 to vector<8x512xf32>
    %57 = arith.subf %25, %56 : vector<8x512xf32>
    %58 = vector.broadcast %55 : f32 to vector<8x512xf32>
    %59 = arith.mulf %57, %58 : vector<8x512xf32>
    %cst_18 = arith.constant 7.000000e+00 : f32
    %60 = vector.broadcast %cst_18 : f32 to vector<8x512xf32>
    %61 = arith.mulf %59, %60 : vector<8x512xf32>
    %62 = math.floor %61 : vector<8x512xf32>
    %cst_19 = arith.constant 0.000000e+00 : f32
    %cst_20 = arith.constant 6.000000e+00 : f32
    %63 = vector.broadcast %cst_19 : f32 to vector<8x512xf32>
    %64 = arith.maximumf %63, %62 : vector<8x512xf32>
    %65 = vector.broadcast %cst_20 : f32 to vector<8x512xf32>
    %66 = arith.minimumf %65, %64 : vector<8x512xf32>
    %67 = arith.subf %61, %66 : vector<8x512xf32>
    %68 = math.absf %67 : vector<8x512xf32>
    %cst_21 = arith.constant 1.000000e+00 : f32
    %69 = vector.broadcast %cst_21 : f32 to vector<8x512xf32>
    %70 = arith.subf %69, %67 : vector<8x512xf32>
    %71 = math.absf %70 : vector<8x512xf32>
    %72 = arith.subf %68, %71 : vector<8x512xf32>
    %73 = math.absf %72 : vector<8x512xf32>
    %cst_22 = arith.constant -14.3571424 : f32
    %74 = vector.broadcast %cst_22 : f32 to vector<8x512xf32>
    %75 = arith.mulf %74, %73 : vector<8x512xf32>
    %76 = math.exp %75 : vector<8x512xf32>
    %cst_23 = arith.constant 1.000000e+00 : f32
    %77 = vector.broadcast %cst_23 : f32 to vector<8x512xf32>
    %78 = arith.cmpf ole, %68, %71 : vector<8x512xf32>
    %79 = arith.select %78, %77, %76 : vector<8x512xi1>, vector<8x512xf32>
    %80 = arith.cmpf ole, %71, %68 : vector<8x512xf32>
    %81 = arith.select %80, %77, %76 : vector<8x512xi1>, vector<8x512xf32>
    %cst_24 = arith.constant 1.000000e+00 : f32
    %82 = vector.broadcast %cst_24 : f32 to vector<8x512xf32>
    %cst_25 = arith.constant 0.000000e+00 : f32
    %83 = vector.broadcast %cst_25 : f32 to vector<8x512xf32>
    %cst_26 = arith.constant 5.000000e-01 : f32
    %84 = vector.broadcast %cst_26 : f32 to vector<8x512xf32>
    %85 = arith.cmpf oge, %66, %84 : vector<8x512xf32>
    %cst_27 = arith.constant 1.0000006 : f32
    %86 = vector.broadcast %cst_27 : f32 to vector<8x512xf32>
    %87 = arith.select %85, %86, %82 : vector<8x512xi1>, vector<8x512xf32>
    %cst_28 = arith.constant 5.81797792E-7 : f32
    %88 = vector.broadcast %cst_28 : f32 to vector<8x512xf32>
    %89 = arith.select %85, %88, %83 : vector<8x512xi1>, vector<8x512xf32>
    %cst_29 = arith.constant 1.500000e+00 : f32
    %90 = vector.broadcast %cst_29 : f32 to vector<8x512xf32>
    %91 = arith.cmpf oge, %66, %90 : vector<8x512xf32>
    %cst_30 = arith.constant 1.0000006 : f32
    %92 = vector.broadcast %cst_30 : f32 to vector<8x512xf32>
    %93 = arith.select %91, %92, %87 : vector<8x512xi1>, vector<8x512xf32>
    %cst_31 = arith.constant 5.81798474E-7 : f32
    %94 = vector.broadcast %cst_31 : f32 to vector<8x512xf32>
    %95 = arith.select %91, %94, %89 : vector<8x512xi1>, vector<8x512xf32>
    %cst_32 = arith.constant 2.500000e+00 : f32
    %96 = vector.broadcast %cst_32 : f32 to vector<8x512xf32>
    %97 = arith.cmpf oge, %66, %96 : vector<8x512xf32>
    %cst_33 = arith.constant 1.0000006 : f32
    %98 = vector.broadcast %cst_33 : f32 to vector<8x512xf32>
    %99 = arith.select %97, %98, %93 : vector<8x512xi1>, vector<8x512xf32>
    %cst_34 = arith.constant 5.81798474E-7 : f32
    %100 = vector.broadcast %cst_34 : f32 to vector<8x512xf32>
    %101 = arith.select %97, %100, %95 : vector<8x512xi1>, vector<8x512xf32>
    %cst_35 = arith.constant 3.500000e+00 : f32
    %102 = vector.broadcast %cst_35 : f32 to vector<8x512xf32>
    %103 = arith.cmpf oge, %66, %102 : vector<8x512xf32>
    %cst_36 = arith.constant 1.0000006 : f32
    %104 = vector.broadcast %cst_36 : f32 to vector<8x512xf32>
    %105 = arith.select %103, %104, %99 : vector<8x512xi1>, vector<8x512xf32>
    %cst_37 = arith.constant 5.81798474E-7 : f32
    %106 = vector.broadcast %cst_37 : f32 to vector<8x512xf32>
    %107 = arith.select %103, %106, %101 : vector<8x512xi1>, vector<8x512xf32>
    %cst_38 = arith.constant 4.500000e+00 : f32
    %108 = vector.broadcast %cst_38 : f32 to vector<8x512xf32>
    %109 = arith.cmpf oge, %66, %108 : vector<8x512xf32>
    %cst_39 = arith.constant 1.0000006 : f32
    %110 = vector.broadcast %cst_39 : f32 to vector<8x512xf32>
    %111 = arith.select %109, %110, %105 : vector<8x512xi1>, vector<8x512xf32>
    %cst_40 = arith.constant 5.81798474E-7 : f32
    %112 = vector.broadcast %cst_40 : f32 to vector<8x512xf32>
    %113 = arith.select %109, %112, %107 : vector<8x512xi1>, vector<8x512xf32>
    %cst_41 = arith.constant 5.500000e+00 : f32
    %114 = vector.broadcast %cst_41 : f32 to vector<8x512xf32>
    %115 = arith.cmpf oge, %66, %114 : vector<8x512xf32>
    %cst_42 = arith.constant 1.0000006 : f32
    %116 = vector.broadcast %cst_42 : f32 to vector<8x512xf32>
    %117 = arith.select %115, %116, %111 : vector<8x512xi1>, vector<8x512xf32>
    %cst_43 = arith.constant 5.81798474E-7 : f32
    %118 = vector.broadcast %cst_43 : f32 to vector<8x512xf32>
    %119 = arith.select %115, %118, %113 : vector<8x512xi1>, vector<8x512xf32>
    %cst_44 = arith.constant 6.000000e+00 : f32
    %120 = vector.broadcast %cst_44 : f32 to vector<8x512xf32>
    %121 = arith.subf %120, %66 : vector<8x512xf32>
    %cst_45 = arith.constant 1.000000e+00 : f32
    %122 = vector.broadcast %cst_45 : f32 to vector<8x512xf32>
    %cst_46 = arith.constant 0.000000e+00 : f32
    %123 = vector.broadcast %cst_46 : f32 to vector<8x512xf32>
    %cst_47 = arith.constant 5.000000e-01 : f32
    %124 = vector.broadcast %cst_47 : f32 to vector<8x512xf32>
    %125 = arith.cmpf oge, %121, %124 : vector<8x512xf32>
    %cst_48 = arith.constant 1.0000006 : f32
    %126 = vector.broadcast %cst_48 : f32 to vector<8x512xf32>
    %127 = arith.select %125, %126, %122 : vector<8x512xi1>, vector<8x512xf32>
    %cst_49 = arith.constant 5.81797792E-7 : f32
    %128 = vector.broadcast %cst_49 : f32 to vector<8x512xf32>
    %129 = arith.select %125, %128, %123 : vector<8x512xi1>, vector<8x512xf32>
    %cst_50 = arith.constant 1.500000e+00 : f32
    %130 = vector.broadcast %cst_50 : f32 to vector<8x512xf32>
    %131 = arith.cmpf oge, %121, %130 : vector<8x512xf32>
    %cst_51 = arith.constant 1.0000006 : f32
    %132 = vector.broadcast %cst_51 : f32 to vector<8x512xf32>
    %133 = arith.select %131, %132, %127 : vector<8x512xi1>, vector<8x512xf32>
    %cst_52 = arith.constant 5.81798474E-7 : f32
    %134 = vector.broadcast %cst_52 : f32 to vector<8x512xf32>
    %135 = arith.select %131, %134, %129 : vector<8x512xi1>, vector<8x512xf32>
    %cst_53 = arith.constant 2.500000e+00 : f32
    %136 = vector.broadcast %cst_53 : f32 to vector<8x512xf32>
    %137 = arith.cmpf oge, %121, %136 : vector<8x512xf32>
    %cst_54 = arith.constant 1.0000006 : f32
    %138 = vector.broadcast %cst_54 : f32 to vector<8x512xf32>
    %139 = arith.select %137, %138, %133 : vector<8x512xi1>, vector<8x512xf32>
    %cst_55 = arith.constant 5.81798474E-7 : f32
    %140 = vector.broadcast %cst_55 : f32 to vector<8x512xf32>
    %141 = arith.select %137, %140, %135 : vector<8x512xi1>, vector<8x512xf32>
    %cst_56 = arith.constant 3.500000e+00 : f32
    %142 = vector.broadcast %cst_56 : f32 to vector<8x512xf32>
    %143 = arith.cmpf oge, %121, %142 : vector<8x512xf32>
    %cst_57 = arith.constant 1.0000006 : f32
    %144 = vector.broadcast %cst_57 : f32 to vector<8x512xf32>
    %145 = arith.select %143, %144, %139 : vector<8x512xi1>, vector<8x512xf32>
    %cst_58 = arith.constant 5.81798474E-7 : f32
    %146 = vector.broadcast %cst_58 : f32 to vector<8x512xf32>
    %147 = arith.select %143, %146, %141 : vector<8x512xi1>, vector<8x512xf32>
    %cst_59 = arith.constant 4.500000e+00 : f32
    %148 = vector.broadcast %cst_59 : f32 to vector<8x512xf32>
    %149 = arith.cmpf oge, %121, %148 : vector<8x512xf32>
    %cst_60 = arith.constant 1.0000006 : f32
    %150 = vector.broadcast %cst_60 : f32 to vector<8x512xf32>
    %151 = arith.select %149, %150, %145 : vector<8x512xi1>, vector<8x512xf32>
    %cst_61 = arith.constant 5.81798474E-7 : f32
    %152 = vector.broadcast %cst_61 : f32 to vector<8x512xf32>
    %153 = arith.select %149, %152, %147 : vector<8x512xi1>, vector<8x512xf32>
    %cst_62 = arith.constant 5.500000e+00 : f32
    %154 = vector.broadcast %cst_62 : f32 to vector<8x512xf32>
    %155 = arith.cmpf oge, %121, %154 : vector<8x512xf32>
    %cst_63 = arith.constant 1.0000006 : f32
    %156 = vector.broadcast %cst_63 : f32 to vector<8x512xf32>
    %157 = arith.select %155, %156, %151 : vector<8x512xi1>, vector<8x512xf32>
    %cst_64 = arith.constant 5.81798474E-7 : f32
    %158 = vector.broadcast %cst_64 : f32 to vector<8x512xf32>
    %159 = arith.select %155, %158, %153 : vector<8x512xi1>, vector<8x512xf32>
    %160 = arith.mulf %79, %117 : vector<8x512xf32>
    %161 = arith.mulf %81, %157 : vector<8x512xf32>
    %162 = arith.addf %160, %161 : vector<8x512xf32>
    %163 = arith.mulf %66, %117 : vector<8x512xf32>
    %164 = arith.subf %163, %119 : vector<8x512xf32>
    %165 = arith.mulf %79, %164 : vector<8x512xf32>
    %cst_65 = arith.constant 1.000000e+00 : f32
    %166 = vector.broadcast %cst_65 : f32 to vector<8x512xf32>
    %167 = arith.addf %66, %166 : vector<8x512xf32>
    %168 = arith.mulf %167, %157 : vector<8x512xf32>
    %169 = arith.addf %168, %159 : vector<8x512xf32>
    %170 = arith.mulf %81, %169 : vector<8x512xf32>
    %171 = arith.addf %165, %170 : vector<8x512xf32>
    %172 = tpu.reciprocal %162 : vector<8x512xf32> -> vector<8x512xf32>
    %173 = arith.mulf %171, %172 : vector<8x512xf32>
    %cst_66 = arith.constant 0.142857149 : f32
    %174 = vector.broadcast %cst_66 : f32 to vector<8x512xf32>
    %175 = arith.mulf %173, %174 : vector<8x512xf32>
    %176 = vector.broadcast %53 : f32 to vector<8x512xf32>
    %177 = arith.mulf %175, %176 : vector<8x512xf32>
    %178 = vector.broadcast %48 : f32 to vector<8x512xf32>
    %179 = arith.addf %177, %178 : vector<8x512xf32>
    %180 = math.absf %179 : vector<8x512xf32>
    %181 = math.log %180 : vector<8x512xf32>
    %cst_67 = arith.constant 1.81818187 : f32
    %182 = vector.broadcast %cst_67 : f32 to vector<8x512xf32>
    %183 = arith.mulf %182, %181 : vector<8x512xf32>
    %184 = math.exp %183 : vector<8x512xf32>
    %cst_68 = arith.constant 1.000000e+00 : f32
    %185 = vector.broadcast %cst_68 : f32 to vector<8x512xf32>
    %cst_69 = arith.constant 0.000000e+00 : f32
    %186 = vector.broadcast %cst_69 : f32 to vector<8x512xf32>
    %187 = arith.cmpf ogt, %179, %186 : vector<8x512xf32>
    %cst_70 = arith.constant 0.000000e+00 : f32
    %188 = vector.broadcast %cst_70 : f32 to vector<8x512xf32>
    %189 = arith.cmpf olt, %179, %188 : vector<8x512xf32>
    %cst_71 = arith.constant 0.000000e+00 : f32
    %190 = vector.broadcast %cst_71 : f32 to vector<8x512xf32>
    %191 = arith.subf %190, %185 : vector<8x512xf32>
    %cst_72 = arith.constant 0.000000e+00 : f32
    %192 = vector.broadcast %cst_72 : f32 to vector<8x512xf32>
    %193 = arith.select %189, %191, %192 : vector<8x512xi1>, vector<8x512xf32>
    %194 = arith.select %187, %185, %193 : vector<8x512xi1>, vector<8x512xf32>
    %195 = arith.mulf %184, %194 : vector<8x512xf32>
    %196 = vector.broadcast %5 : f32 to vector<8x512xf32>
    %197 = arith.addf %195, %196 : vector<8x512xf32>
    %c0_73 = arith.constant 0 : index
    %c0_74 = arith.constant 0 : index
    %198 = vector.load %arg3[%c0_73, %c0_74] : memref<8x512xf32, #tpu.memory_space<vmem>>, vector<8x512xf32>
    tpu.vector_store %arg3[%c0_73, %c0_74], %197 {strides = array<i32>} : memref<8x512xf32, #tpu.memory_space<vmem>>, vector<8x512xf32>,
    return
  }
  func.func @transform_0(%arg0: i32) -> i32 {
    %c0_i32 = arith.constant 0 : i32
    %c0_i32_0 = arith.constant 0 : i32
    return %c0_i32 : i32
  }
  func.func @transform_1(%arg0: i32) -> (i32, i32) {
    %c0_i32 = arith.constant 0 : i32
    %c0_i32_0 = arith.constant 0 : i32
    %c0_i32_1 = arith.constant 0 : i32
    return %c0_i32, %c0_i32_0 : i32, i32
  }
  func.func @transform_2(%arg0: i32) -> (i32, i32) {
    %c0_i32 = arith.constant 0 : i32
    %c0_i32_0 = arith.constant 0 : i32
    %c0_i32_1 = arith.constant 0 : i32
    return %c0_i32, %c0_i32_0 : i32, i32
  }
}

</mosaic_0001>

<llo_original>
// kernel: tpu_custom_call.1
$region0: #{tpu_custom_call.1}
  #allocation0 [shape = 'u32[]', space=smem, size = 0x4, offset = 0x4, fixed_abs, tag = 'smem constant byte address 0x4 - core index']
  #allocation1 [shape = 'u32[144,128]{1,0:T(1,128)}', space=vmem, size = 0x12000, scoped, tag = 'internal scratch']
  %s0 = inlined_call_operand.hbm [shape: f32[2], index: 0, kind: input, shape index: {}]
  %s1 = inlined_call_operand.hbm [shape: f32[8,512], index: 1, kind: input, shape index: {}]
  %s2 = inlined_call_operand.hbm [shape: f32[8,512], index: 2, kind: output, shape index: {}]
  %s3 = sld [smem:[#allocation0]]
  $region26: #{tpu_custom_call.1} parent=0
    _
  %s5 = ssub.s32 1, %s3
  %s6 = scalar_select 0, %s5, %s3
  $region1: #{tpu_custom_call.1} parent=0
    #allocation2 [shape = 'u8[512]{0}', space=smem, size = 0x200, scoped, tag = 'input window, operand 0, single buffered']
    #allocation3 [shape = 's32[1]{0}', space=sflag, size = 0x4, scoped, tag = 'scoped memory for tpu_custom_call.1']
    #allocation4 [shape = 's32[1]{0}', space=sflag, size = 0x4, scoped, tag = 'scoped memory for tpu_custom_call.1']
    #allocation5 [shape = 's32[1]{0}', space=sflag, size = 0x4, scoped, tag = 'scoped memory for tpu_custom_call.1']
    #allocation6 [shape = 'u8[16384]{0}', space=vmem, size = 0x4000, scoped, tag = 'input window, operand 1, single buffered']
    #allocation7 [shape = 'u8[16384]{0}', space=vmem, size = 0x4000, scoped, tag = 'output window, operand 0, single buffered']
    %7 = vsyncpa [#allocation5], 0
    %8 = vsyncpa [#allocation3], 0
    %9 = vsyncpa [#allocation4], 0
    // Predicated region
    $region2: #{tpu_custom_call.1} parent=1 // pred_check
      _
    $region3: #{tpu_custom_call.1} parent=1 // pred_check_branch
      %11 = sbr.rel (0) target = $region5
    $region4: #{tpu_custom_call.1} parent=1 // pred_region
      %s13 = ssub.s32 16, 16
      %14 = vsyncadd [#allocation5], %s13
      %17 = dma.hbm_to_smem %s0, 16, [#allocation2], [#allocation5]
    $region5: #{tpu_custom_call.1} parent=1 // pred_fallthru
      _
    // Predicated region
    $region6: #{tpu_custom_call.1} parent=1 // pred_check
      _
    $region7: #{tpu_custom_call.1} parent=1 // pred_check_branch
      %19 = sbr.rel (0) target = $region9
    $region8: #{tpu_custom_call.1} parent=1 // pred_region
      %s21 = ssub.s32 512, 512
      %22 = vsyncadd [#allocation3], %s21
      %s24 = sshll.u32 [#allocation6], 4
      %s25 = int_to_ptr.vmem [resolvable:$true] %s24
      %27 = dma.hbm_to_vmem [thread:$0]  %s1, 512, %s25, [#allocation3]
    $region9: #{tpu_custom_call.1} parent=1 // pred_fallthru
      _
    // Predicated region
    $region10: #{tpu_custom_call.1} parent=1 // pred_check
      _
    $region11: #{tpu_custom_call.1} parent=1 // pred_check_branch
      %29 = sbr.rel (0) target = $region13
    $region12: #{tpu_custom_call.1} parent=1 // pred_region
      %30 = dma.done [#allocation5], 16
    $region13: #{tpu_custom_call.1} parent=1 // pred_fallthru
      _
    // Predicated region
    $region14: #{tpu_custom_call.1} parent=1 // pred_check
      _
    $region15: #{tpu_custom_call.1} parent=1 // pred_check_branch
      %32 = sbr.rel (0) target = $region17
    $region16: #{tpu_custom_call.1} parent=1 // pred_region
      %33 = dma.done [#allocation3], 512
    $region17: #{tpu_custom_call.1} parent=1 // pred_fallthru
      _
    %34 = sfence
    %v35 = vld [vmem:[#allocation6] sm:$0xff]
    %v36 = vld [vmem:[#allocation6 + $0x8] sm:$0xff]
    %v37 = vld [vmem:[#allocation6 + $0x10] sm:$0xff]
    %v38 = vld [vmem:[#allocation6 + $0x18] sm:$0xff]
    %v39 = vadd.f32 %v35, %v36
    %v40 = vadd.f32 %v39, %v37
    %v41 = vadd.f32 %v40, %v38
    %42 = vadd.xlane.f32.xlu0 %v41
    %v43 = vpop.xlane.xlu0 %42
    %v44 = vrot.slane %v43, 4
    %v45 = vadd.f32 %v43, %v44
    %v46 = vrot.slane %v45, 2
    %v47 = vadd.f32 %v45, %v46
    %v48 = vrot.slane %v47, 1
    %v49 = vadd.f32 %v47, %v48
    %s50 = vtos %v49
    %s51 = smul.f32 %s50, 0.00048828125
    %v52 = vstv %s51
    %v53 = vsub.f32 %v35, %v52
    %v54 = vsub.f32 %v36, %v52
    %v55 = vsub.f32 %v37, %v52
    %v56 = vsub.f32 %v38, %v52
    %vm57 = vcmp.gt.f32.partialorder %v53, 0.0
    %vm58 = vcmp.gt.f32.partialorder %v54, 0.0
    %vm59 = vcmp.gt.f32.partialorder %v55, 0.0
    %vm60 = vcmp.gt.f32.partialorder %v56, 0.0
    %vm61 = vcmp.lt.f32.partialorder %v53, 0.0
    %vm62 = vcmp.lt.f32.partialorder %v54, 0.0
    %vm63 = vcmp.lt.f32.partialorder %v55, 0.0
    %vm64 = vcmp.lt.f32.partialorder %v56, 0.0
    %v65 = vsel %vm61, -1.0, 0.0
    %v66 = vsel %vm62, -1.0, 0.0
    %v67 = vsel %vm63, -1.0, 0.0
    %v68 = vsel %vm64, -1.0, 0.0
    %v69 = vsel %vm57, 1.0, %v65
    %v70 = vsel %vm58, 1.0, %v66
    %v71 = vsel %vm59, 1.0, %v67
    %v72 = vsel %vm60, 1.0, %v68
    %v73 = vand.u32 2147483647, %v53
    %v74 = vand.u32 2147483647, %v54
    %v75 = vand.u32 2147483647, %v55
    %v76 = vand.u32 2147483647, %v56
    %v77 = vlog2.pop %v73
    %v78 = vmul.f32 %v77, 0.6931472
    %v79 = vlog2.pop %v74
    %v80 = vmul.f32 %v79, 0.6931472
    %v81 = vlog2.pop %v75
    %v82 = vmul.f32 %v81, 0.6931472
    %v83 = vlog2.pop %v76
    %v84 = vmul.f32 %v83, 0.6931472
    %v85 = vmul.f32 %v78, 0.55
    %v86 = vmul.f32 %v80, 0.55
    %v87 = vmul.f32 %v82, 0.55
    %v88 = vmul.f32 %v84, 0.55
    %v89 = vmul.f32 %v85, 1.442695
    %v90 = vpow.pop %v89
    %v91 = vmul.f32 %v86, 1.442695
    %v92 = vpow.pop %v91
    %v93 = vmul.f32 %v87, 1.442695
    %v94 = vpow.pop %v93
    %v95 = vmul.f32 %v88, 1.442695
    %v96 = vpow.pop %v95
    %v97 = vmul.f32 %v69, %v90
    %v98 = vmul.f32 %v70, %v92
    %v99 = vmul.f32 %v71, %v94
    %v100 = vmul.f32 %v72, %v96
    %v101 = vadd.f32 %v97, 1e-06
    %v102 = vadd.f32 %v98, 1e-06
    %v103 = vadd.f32 %v99, 1e-06
    %v104 = vadd.f32 %v100, 1e-06
    %v105 = vlaneseq
    %v106 = vshrl.u32 %v105, 7
    %v107 = vlaneseq
    %v108 = vand.u32 %v107, 127
    %v109 = vadd.s32 %v108, 128
    %v110 = vadd.s32 %v108, 256
    %v111 = vadd.s32 %v108, 384
    %v112 = vmul.u32 %v106, 512
    %v113 = vadd.s32 %v112, %v108
    %v114 = vadd.s32 %v112, %v109
    %v115 = vadd.s32 %v112, %v110
    %v116 = vadd.s32 %v112, %v111
    %vm117 = vcmp.lt.s32.totalorder %v113, 2048
    %vm118 = vcmp.lt.s32.totalorder %v114, 2048
    %vm119 = vcmp.lt.s32.totalorder %v115, 2048
    %vm120 = vcmp.lt.s32.totalorder %v116, 2048
    %v121 = vsel %vm117, %v101, inf
    %v122 = vsel %vm118, %v102, inf
    %v123 = vsel %vm119, %v103, inf
    %v124 = vsel %vm120, %v104, inf
    %v125 = vmin.f32 %v121, %v122
    %v126 = vmin.f32 %v123, %v124
    %v127 = vmin.f32 %v125, %v126
    %128 = vmin.xlane.f32.xlu0 %v127
    %v129 = vpop.xlane.xlu0 %128
    %v130 = vrot.slane %v129, 4
    %v131 = vmin.f32 %v129, %v130
    %v132 = vrot.slane %v131, 2
    %v133 = vmin.f32 %v131, %v132
    %v134 = vrot.slane %v133, 1
    %v135 = vmin.f32 %v133, %v134
    %s136 = vtos %v135
    %v137 = vsel %vm117, %v101, -inf
    %v138 = vsel %vm118, %v102, -inf
    %v139 = vsel %vm119, %v103, -inf
    %v140 = vsel %vm120, %v104, -inf
    %v141 = vmax.f32 %v137, %v138
    %v142 = vmax.f32 %v139, %v140
    %v143 = vmax.f32 %v141, %v142
    %144 = vmax.xlane.f32.xlu0 %v143
    %v145 = vpop.xlane.xlu0 %144
    %v146 = vrot.slane %v145, 4
    %v147 = vmax.f32 %v145, %v146
    %v148 = vrot.slane %v147, 2
    %v149 = vmax.f32 %v147, %v148
    %v150 = vrot.slane %v149, 1
    %v151 = vmax.f32 %v149, %v150
    %s152 = vtos %v151
    %s153 = sld [smem:[#allocation2]]
    %s154 = smax.f32 %s153, %s136
    %s155 = ssub.f32 %s152, 1e-06
    %s156 = smin.f32 %s154, %s155
    %s157 = sld [smem:[#allocation2 + $0x1]]
    %s158 = sadd.f32 %s156, 1e-06
    %s159 = smax.f32 %s157, %s158
    %s160 = smin.f32 %s159, %s152
    %s161 = ssub.f32 %s160, %s156
    %s162 = sadd.f32 %s161, 1e-06
    %v163 = vstv %s162
    %v164 = vrcp.pop %v163
    %s165 = vtos %v164
    %v166 = vstv %s156
    %v167 = vsub.f32 %v101, %v166
    %v168 = vsub.f32 %v102, %v166
    %v169 = vsub.f32 %v103, %v166
    %v170 = vsub.f32 %v104, %v166
    %v171 = vstv %s165
    %v172 = vmul.f32 %v167, %v171
    %v173 = vmul.f32 %v168, %v171
    %v174 = vmul.f32 %v169, %v171
    %v175 = vmul.f32 %v170, %v171
    %v176 = vmul.f32 %v172, 7.0
    %v177 = vmul.f32 %v173, 7.0
    %v178 = vmul.f32 %v174, 7.0
    %v179 = vmul.f32 %v175, 7.0
    %v180 = vfloor.f32 %v176
    %v181 = vfloor.f32 %v177
    %v182 = vfloor.f32 %v178
    %v183 = vfloor.f32 %v179
    %v184 = vmax.f32 %v180, 0.0
    %v185 = vmax.f32 %v181, 0.0
    %v186 = vmax.f32 %v182, 0.0
    %v187 = vmax.f32 %v183, 0.0
    %v188 = vmin.f32 %v184, 6.0
    %v189 = vmin.f32 %v185, 6.0
    %v190 = vmin.f32 %v186, 6.0
    %v191 = vmin.f32 %v187, 6.0
    %v192 = vsub.f32 %v176, %v188
    %v193 = vsub.f32 %v177, %v189
    %v194 = vsub.f32 %v178, %v190
    %v195 = vsub.f32 %v179, %v191
    %v196 = vand.u32 2147483647, %v192
    %v197 = vand.u32 2147483647, %v193
    %v198 = vand.u32 2147483647, %v194
    %v199 = vand.u32 2147483647, %v195
    %v200 = vsub.f32 1.0, %v192
    %v201 = vsub.f32 1.0, %v193
    %v202 = vsub.f32 1.0, %v194
    %v203 = vsub.f32 1.0, %v195
    %v204 = vand.u32 2147483647, %v200
    %v205 = vand.u32 2147483647, %v201
    %v206 = vand.u32 2147483647, %v202
    %v207 = vand.u32 2147483647, %v203
    %v208 = vsub.f32 %v196, %v204
    %v209 = vsub.f32 %v197, %v205
    %v210 = vsub.f32 %v198, %v206
    %v211 = vsub.f32 %v199, %v207
    %v212 = vand.u32 2147483647, %v208
    %v213 = vand.u32 2147483647, %v209
    %v214 = vand.u32 2147483647, %v210
    %v215 = vand.u32 2147483647, %v211
    %v216 = vmul.f32 %v212, -14.357142
    %v217 = vmul.f32 %v213, -14.357142
    %v218 = vmul.f32 %v214, -14.357142
    %v219 = vmul.f32 %v215, -14.357142
    %v220 = vmul.f32 %v216, 1.442695
    %v221 = vpow.pop %v220
    %v222 = vmul.f32 %v217, 1.442695
    %v223 = vpow.pop %v222
    %v224 = vmul.f32 %v218, 1.442695
    %v225 = vpow.pop %v224
    %v226 = vmul.f32 %v219, 1.442695
    %v227 = vpow.pop %v226
    %vm228 = vcmp.le.f32.partialorder %v196, %v204
    %vm229 = vcmp.le.f32.partialorder %v197, %v205
    %vm230 = vcmp.le.f32.partialorder %v198, %v206
    %vm231 = vcmp.le.f32.partialorder %v199, %v207
    %v232 = vsel %vm228, 1.0, %v221
    %v233 = vsel %vm229, 1.0, %v223
    %v234 = vsel %vm230, 1.0, %v225
    %v235 = vsel %vm231, 1.0, %v227
    %vm236 = vcmp.le.f32.partialorder %v204, %v196
    %vm237 = vcmp.le.f32.partialorder %v205, %v197
    %vm238 = vcmp.le.f32.partialorder %v206, %v198
    %vm239 = vcmp.le.f32.partialorder %v207, %v199
    %v240 = vsel %vm236, 1.0, %v221
    %v241 = vsel %vm237, 1.0, %v223
    %v242 = vsel %vm238, 1.0, %v225
    %v243 = vsel %vm239, 1.0, %v227
    %vm244 = vcmp.ge.f32.partialorder %v188, 0.5
    %vm245 = vcmp.ge.f32.partialorder %v189, 0.5
    %vm246 = vcmp.ge.f32.partialorder %v190, 0.5
    %vm247 = vcmp.ge.f32.partialorder %v191, 0.5
    %v248 = vsel %vm244, 1.0000006, 1.0
    %v249 = vsel %vm245, 1.0000006, 1.0
    %v250 = vsel %vm246, 1.0000006, 1.0
    %v251 = vsel %vm247, 1.0000006, 1.0
    %v252 = vsel %vm244, 5.817978e-07, 0.0
    %v253 = vsel %vm245, 5.817978e-07, 0.0
    %v254 = vsel %vm246, 5.817978e-07, 0.0
    %v255 = vsel %vm247, 5.817978e-07, 0.0
    %vm256 = vcmp.ge.f32.partialorder %v188, 1.5
    %vm257 = vcmp.ge.f32.partialorder %v189, 1.5
    %vm258 = vcmp.ge.f32.partialorder %v190, 1.5
    %vm259 = vcmp.ge.f32.partialorder %v191, 1.5
    %v260 = vsel %vm256, 1.0000006, %v248
    %v261 = vsel %vm257, 1.0000006, %v249
    %v262 = vsel %vm258, 1.0000006, %v250
    %v263 = vsel %vm259, 1.0000006, %v251
    %v264 = vsel %vm256, 5.817985e-07, %v252
    %v265 = vsel %vm257, 5.817985e-07, %v253
    %v266 = vsel %vm258, 5.817985e-07, %v254
    %v267 = vsel %vm259, 5.817985e-07, %v255
    %vm268 = vcmp.ge.f32.partialorder %v188, 2.5
    %vm269 = vcmp.ge.f32.partialorder %v189, 2.5
    %vm270 = vcmp.ge.f32.partialorder %v190, 2.5
    %vm271 = vcmp.ge.f32.partialorder %v191, 2.5
    %v272 = vsel %vm268, 1.0000006, %v260
    %v273 = vsel %vm269, 1.0000006, %v261
    %v274 = vsel %vm270, 1.0000006, %v262
    %v275 = vsel %vm271, 1.0000006, %v263
    %v276 = vsel %vm268, 5.817985e-07, %v264
    %v277 = vsel %vm269, 5.817985e-07, %v265
    %v278 = vsel %vm270, 5.817985e-07, %v266
    %v279 = vsel %vm271, 5.817985e-07, %v267
    %vm280 = vcmp.ge.f32.partialorder %v188, 3.5
    %vm281 = vcmp.ge.f32.partialorder %v189, 3.5
    %vm282 = vcmp.ge.f32.partialorder %v190, 3.5
    %vm283 = vcmp.ge.f32.partialorder %v191, 3.5
    %v284 = vsel %vm280, 1.0000006, %v272
    %v285 = vsel %vm281, 1.0000006, %v273
    %v286 = vsel %vm282, 1.0000006, %v274
    %v287 = vsel %vm283, 1.0000006, %v275
    %v288 = vsel %vm280, 5.817985e-07, %v276
    %v289 = vsel %vm281, 5.817985e-07, %v277
    %v290 = vsel %vm282, 5.817985e-07, %v278
    %v291 = vsel %vm283, 5.817985e-07, %v279
    %vm292 = vcmp.ge.f32.partialorder %v188, 4.5
    %vm293 = vcmp.ge.f32.partialorder %v189, 4.5
    %vm294 = vcmp.ge.f32.partialorder %v190, 4.5
    %vm295 = vcmp.ge.f32.partialorder %v191, 4.5
    %v296 = vsel %vm292, 1.0000006, %v284
    %v297 = vsel %vm293, 1.0000006, %v285
    %v298 = vsel %vm294, 1.0000006, %v286
    %v299 = vsel %vm295, 1.0000006, %v287
    %v300 = vsel %vm292, 5.817985e-07, %v288
    %v301 = vsel %vm293, 5.817985e-07, %v289
    %v302 = vsel %vm294, 5.817985e-07, %v290
    %v303 = vsel %vm295, 5.817985e-07, %v291
    %vm304 = vcmp.ge.f32.partialorder %v188, 5.5
    %vm305 = vcmp.ge.f32.partialorder %v189, 5.5
    %vm306 = vcmp.ge.f32.partialorder %v190, 5.5
    %vm307 = vcmp.ge.f32.partialorder %v191, 5.5
    %v308 = vsel %vm304, 1.0000006, %v296
    %v309 = vsel %vm305, 1.0000006, %v297
    %v310 = vsel %vm306, 1.0000006, %v298
    %v311 = vsel %vm307, 1.0000006, %v299
    %v312 = vsel %vm304, 5.817985e-07, %v300
    %v313 = vsel %vm305, 5.817985e-07, %v301
    %v314 = vsel %vm306, 5.817985e-07, %v302
    %v315 = vsel %vm307, 5.817985e-07, %v303
    %v316 = vsub.f32 6.0, %v188
    %v317 = vsub.f32 6.0, %v189
    %v318 = vsub.f32 6.0, %v190
    %v319 = vsub.f32 6.0, %v191
    %vm320 = vcmp.ge.f32.partialorder %v316, 0.5
    %vm321 = vcmp.ge.f32.partialorder %v317, 0.5
    %vm322 = vcmp.ge.f32.partialorder %v318, 0.5
    %vm323 = vcmp.ge.f32.partialorder %v319, 0.5
    %v324 = vsel %vm320, 1.0000006, 1.0
    %v325 = vsel %vm321, 1.0000006, 1.0
    %v326 = vsel %vm322, 1.0000006, 1.0
    %v327 = vsel %vm323, 1.0000006, 1.0
    %v328 = vsel %vm320, 5.817978e-07, 0.0
    %v329 = vsel %vm321, 5.817978e-07, 0.0
    %v330 = vsel %vm322, 5.817978e-07, 0.0
    %v331 = vsel %vm323, 5.817978e-07, 0.0
    %vm332 = vcmp.ge.f32.partialorder %v316, 1.5
    %vm333 = vcmp.ge.f32.partialorder %v317, 1.5
    %vm334 = vcmp.ge.f32.partialorder %v318, 1.5
    %vm335 = vcmp.ge.f32.partialorder %v319, 1.5
    %v336 = vsel %vm332, 1.0000006, %v324
    %v337 = vsel %vm333, 1.0000006, %v325
    %v338 = vsel %vm334, 1.0000006, %v326
    %v339 = vsel %vm335, 1.0000006, %v327
    %v340 = vsel %vm332, 5.817985e-07, %v328
    %v341 = vsel %vm333, 5.817985e-07, %v329
    %v342 = vsel %vm334, 5.817985e-07, %v330
    %v343 = vsel %vm335, 5.817985e-07, %v331
    %vm344 = vcmp.ge.f32.partialorder %v316, 2.5
    %vm345 = vcmp.ge.f32.partialorder %v317, 2.5
    %vm346 = vcmp.ge.f32.partialorder %v318, 2.5
    %vm347 = vcmp.ge.f32.partialorder %v319, 2.5
    %v348 = vsel %vm344, 1.0000006, %v336
    %v349 = vsel %vm345, 1.0000006, %v337
    %v350 = vsel %vm346, 1.0000006, %v338
    %v351 = vsel %vm347, 1.0000006, %v339
    %v352 = vsel %vm344, 5.817985e-07, %v340
    %v353 = vsel %vm345, 5.817985e-07, %v341
    %v354 = vsel %vm346, 5.817985e-07, %v342
    %v355 = vsel %vm347, 5.817985e-07, %v343
    %vm356 = vcmp.ge.f32.partialorder %v316, 3.5
    %vm357 = vcmp.ge.f32.partialorder %v317, 3.5
    %vm358 = vcmp.ge.f32.partialorder %v318, 3.5
    %vm359 = vcmp.ge.f32.partialorder %v319, 3.5
    %v360 = vsel %vm356, 1.0000006, %v348
    %v361 = vsel %vm357, 1.0000006, %v349
    %v362 = vsel %vm358, 1.0000006, %v350
    %v363 = vsel %vm359, 1.0000006, %v351
    %v364 = vsel %vm356, 5.817985e-07, %v352
    %v365 = vsel %vm357, 5.817985e-07, %v353
    %v366 = vsel %vm358, 5.817985e-07, %v354
    %v367 = vsel %vm359, 5.817985e-07, %v355
    %vm368 = vcmp.ge.f32.partialorder %v316, 4.5
    %vm369 = vcmp.ge.f32.partialorder %v317, 4.5
    %vm370 = vcmp.ge.f32.partialorder %v318, 4.5
    %vm371 = vcmp.ge.f32.partialorder %v319, 4.5
    %v372 = vsel %vm368, 1.0000006, %v360
    %v373 = vsel %vm369, 1.0000006, %v361
    %v374 = vsel %vm370, 1.0000006, %v362
    %v375 = vsel %vm371, 1.0000006, %v363
    %v376 = vsel %vm368, 5.817985e-07, %v364
    %v377 = vsel %vm369, 5.817985e-07, %v365
    %v378 = vsel %vm370, 5.817985e-07, %v366
    %v379 = vsel %vm371, 5.817985e-07, %v367
    %vm380 = vcmp.ge.f32.partialorder %v316, 5.5
    %vm381 = vcmp.ge.f32.partialorder %v317, 5.5
    %vm382 = vcmp.ge.f32.partialorder %v318, 5.5
    %vm383 = vcmp.ge.f32.partialorder %v319, 5.5
    %v384 = vsel %vm380, 1.0000006, %v372
    %v385 = vsel %vm381, 1.0000006, %v373
    %v386 = vsel %vm382, 1.0000006, %v374
    %v387 = vsel %vm383, 1.0000006, %v375
    %v388 = vsel %vm380, 5.817985e-07, %v376
    %v389 = vsel %vm381, 5.817985e-07, %v377
    %v390 = vsel %vm382, 5.817985e-07, %v378
    %v391 = vsel %vm383, 5.817985e-07, %v379
    %v392 = vmul.f32 %v232, %v308
    %v393 = vmul.f32 %v233, %v309
    %v394 = vmul.f32 %v234, %v310
    %v395 = vmul.f32 %v235, %v311
    %v396 = vmul.f32 %v240, %v384
    %v397 = vmul.f32 %v241, %v385
    %v398 = vmul.f32 %v242, %v386
    %v399 = vmul.f32 %v243, %v387
    %v400 = vadd.f32 %v392, %v396
    %v401 = vadd.f32 %v393, %v397
    %v402 = vadd.f32 %v394, %v398
    %v403 = vadd.f32 %v395, %v399
    %v404 = vmul.f32 %v188, %v308
    %v405 = vmul.f32 %v189, %v309
    %v406 = vmul.f32 %v190, %v310
    %v407 = vmul.f32 %v191, %v311
    %v408 = vsub.f32 %v404, %v312
    %v409 = vsub.f32 %v405, %v313
    %v410 = vsub.f32 %v406, %v314
    %v411 = vsub.f32 %v407, %v315
    %v412 = vmul.f32 %v232, %v408
    %v413 = vmul.f32 %v233, %v409
    %v414 = vmul.f32 %v234, %v410
    %v415 = vmul.f32 %v235, %v411
    %v416 = vadd.f32 %v188, 1.0
    %v417 = vadd.f32 %v189, 1.0
    %v418 = vadd.f32 %v190, 1.0
    %v419 = vadd.f32 %v191, 1.0
    %v420 = vmul.f32 %v416, %v384
    %v421 = vmul.f32 %v417, %v385
    %v422 = vmul.f32 %v418, %v386
    %v423 = vmul.f32 %v419, %v387
    %v424 = vadd.f32 %v420, %v388
    %v425 = vadd.f32 %v421, %v389
    %v426 = vadd.f32 %v422, %v390
    %v427 = vadd.f32 %v423, %v391
    %v428 = vmul.f32 %v240, %v424
    %v429 = vmul.f32 %v241, %v425
    %v430 = vmul.f32 %v242, %v426
    %v431 = vmul.f32 %v243, %v427
    %v432 = vadd.f32 %v412, %v428
    %v433 = vadd.f32 %v413, %v429
    %v434 = vadd.f32 %v414, %v430
    %v435 = vadd.f32 %v415, %v431
    %v436 = vrcp.pop %v400
    %v437 = vrcp.pop %v401
    %v438 = vrcp.pop %v402
    %v439 = vrcp.pop %v403
    %v440 = vmul.f32 %v432, %v436
    %v441 = vmul.f32 %v433, %v437
    %v442 = vmul.f32 %v434, %v438
    %v443 = vmul.f32 %v435, %v439
    %v444 = vmul.f32 %v440, 0.14285715
    %v445 = vmul.f32 %v441, 0.14285715
    %v446 = vmul.f32 %v442, 0.14285715
    %v447 = vmul.f32 %v443, 0.14285715
    %v448 = vstv %s161
    %v449 = vmul.f32 %v444, %v448
    %v450 = vmul.f32 %v445, %v448
    %v451 = vmul.f32 %v446, %v448
    %v452 = vmul.f32 %v447, %v448
    %v453 = vadd.f32 %v449, %v166
    %v454 = vadd.f32 %v450, %v166
    %v455 = vadd.f32 %v451, %v166
    %v456 = vadd.f32 %v452, %v166
    %v457 = vand.u32 2147483647, %v453
    %v458 = vand.u32 2147483647, %v454
    %v459 = vand.u32 2147483647, %v455
    %v460 = vand.u32 2147483647, %v456
    %v461 = vlog2.pop %v457
    %v462 = vmul.f32 %v461, 0.6931472
    %v463 = vlog2.pop %v458
    %v464 = vmul.f32 %v463, 0.6931472
    %v465 = vlog2.pop %v459
    %v466 = vmul.f32 %v465, 0.6931472
    %v467 = vlog2.pop %v460
    %v468 = vmul.f32 %v467, 0.6931472
    %v469 = vmul.f32 %v462, 1.8181819
    %v470 = vmul.f32 %v464, 1.8181819
    %v471 = vmul.f32 %v466, 1.8181819
    %v472 = vmul.f32 %v468, 1.8181819
    %v473 = vmul.f32 %v469, 1.442695
    %v474 = vpow.pop %v473
    %v475 = vmul.f32 %v470, 1.442695
    %v476 = vpow.pop %v475
    %v477 = vmul.f32 %v471, 1.442695
    %v478 = vpow.pop %v477
    %v479 = vmul.f32 %v472, 1.442695
    %v480 = vpow.pop %v479
    %vm481 = vcmp.gt.f32.partialorder %v453, 0.0
    %vm482 = vcmp.gt.f32.partialorder %v454, 0.0
    %vm483 = vcmp.gt.f32.partialorder %v455, 0.0
    %vm484 = vcmp.gt.f32.partialorder %v456, 0.0
    %vm485 = vcmp.lt.f32.partialorder %v453, 0.0
    %vm486 = vcmp.lt.f32.partialorder %v454, 0.0
    %vm487 = vcmp.lt.f32.partialorder %v455, 0.0
    %vm488 = vcmp.lt.f32.partialorder %v456, 0.0
    %v489 = vsel %vm485, -1.0, 0.0
    %v490 = vsel %vm486, -1.0, 0.0
    %v491 = vsel %vm487, -1.0, 0.0
    %v492 = vsel %vm488, -1.0, 0.0
    %v493 = vsel %vm481, 1.0, %v489
    %v494 = vsel %vm482, 1.0, %v490
    %v495 = vsel %vm483, 1.0, %v491
    %v496 = vsel %vm484, 1.0, %v492
    %v497 = vmul.f32 %v474, %v493
    %v498 = vmul.f32 %v476, %v494
    %v499 = vmul.f32 %v478, %v495
    %v500 = vmul.f32 %v480, %v496
    %v501 = vadd.f32 %v497, %v52
    %v502 = vadd.f32 %v498, %v52
    %v503 = vadd.f32 %v499, %v52
    %v504 = vadd.f32 %v500, %v52
    %505 = vst [vmem:[#allocation7] sm:$0xff] %v501
    %506 = vst [vmem:[#allocation7 + $0x8] sm:$0xff] %v502
    %507 = vst [vmem:[#allocation7 + $0x10] sm:$0xff] %v503
    %508 = vst [vmem:[#allocation7 + $0x18] sm:$0xff] %v504
    // Predicated region
    $region18: #{tpu_custom_call.1} parent=1 // pred_check
      _
    $region19: #{tpu_custom_call.1} parent=1 // pred_check_branch
      %510 = sbr.rel (0) target = $region21
    $region20: #{tpu_custom_call.1} parent=1 // pred_region
      %s512 = ssub.s32 512, 512
      %513 = vsyncadd [#allocation4], %s512
      %s515 = sshll.u32 [#allocation7], 4
      %s516 = int_to_ptr.vmem [resolvable:$true] %s515
      %518 = dma.vmem_to_hbm [thread:$0]  %s516, 512, %s2, [#allocation4]
    $region21: #{tpu_custom_call.1} parent=1 // pred_fallthru
      _
    // Predicated region
    $region22: #{tpu_custom_call.1} parent=1 // pred_check
      _
    $region23: #{tpu_custom_call.1} parent=1 // pred_check_branch
      %520 = sbr.rel (0) target = $region25
    $region24: #{tpu_custom_call.1} parent=1 // pred_region
      %521 = dma.done [#allocation4], 512
    $region25: #{tpu_custom_call.1} parent=1 // pred_fallthru
      _
    %522 = vsyncpa [#allocation3], 1
    %523 = vsyncpa [#allocation4], 1
    %524 = vsyncpa [#allocation5], 1

</llo_original>
